<compile_context>
chip_gen: v6e
topology: v6e:2x2x1
jax: 0.10.0
libtpu: 0.0.40
codegen_flags: <defaults>
</compile_context>

<pallas_src>
import numpy as np
import jax
import jax.numpy as jnp
from jax import lax
from jax.experimental import pallas as pl
from jax.experimental.pallas import tpu as pltpu

ALPHA = 0.25
EPSILON = 1e-4
TOPK = 32
NEG_SLOPE = 0.2
MASK_VAL = np.float32(-9e15)


# ----------------------------------------------------------------------------
# Host-side PPR preprocessing (mirror of the numba routines; data-dependent
# sparse push + top-k truncation — no clean Pallas equivalent).
# TODO(synk): PPR push algorithm stays on host (dict/worklist based, data dependent).
# ----------------------------------------------------------------------------
def _calc_ppr_node(inode, indptr, indices, deg, alpha, epsilon):
    alpha_eps = np.float32(alpha * epsilon)
    f32_0 = np.float32(0.0)
    p = {inode: f32_0}
    r = {inode: np.float32(alpha)}
    q = [inode]
    while q:
        unode = q.pop()
        res = r.get(unode, f32_0)
        p[unode] = p.get(unode, f32_0) + res
        r[unode] = f32_0
        for vnode in indices[indptr[unode]:indptr[unode + 1]]:
            vnode = int(vnode)
            _val = np.float32((1.0 - alpha) * res / deg[unode])
            r[vnode] = r.get(vnode, f32_0) + _val
            if r[vnode] >= alpha_eps * deg[vnode] and vnode not in q:
                q.append(vnode)
    return list(p.keys()), list(p.values())


def calc_ppr_topk(indptr, indices, deg, alpha, epsilon, n_nodes, topk):
    PPR = np.zeros((n_nodes, n_nodes), dtype=np.float32)
    for i in range(n_nodes):
        j, val = _calc_ppr_node(i, indptr, indices, deg, alpha, epsilon)
        j_np = np.array(j, dtype=np.int64)
        val_np = np.array(val, dtype=np.float32)
        idx_topk = np.argsort(val_np)[-topk:]
        PPR[i, j_np[idx_topk]] = val_np[idx_topk]
    deg_sqrt = np.sqrt(np.maximum(deg, 1e-12))
    deg_inv_sqrt = 1.0 / deg_sqrt
    rows, cols = PPR.nonzero()
    for row, col in zip(rows, cols):
        PPR[row, col] *= np.float32(deg_sqrt[row] * deg_inv_sqrt[col])
    return PPR


def compute_ppr(adj_np, n_nodes, alpha=ALPHA, epsilon=EPSILON, topk=TOPK):
    adj_np = np.asarray(adj_np, dtype=np.float32)
    deg = adj_np.sum(1)
    indptr = np.zeros(n_nodes + 1, dtype=np.int64)
    indices_list = []
    for i in range(n_nodes):
        nz = np.nonzero(adj_np[i])[0]
        indices_list.append(nz)
        indptr[i + 1] = indptr[i] + nz.size
    indices = (np.concatenate(indices_list) if indices_list
               else np.zeros(0, np.int64)).astype(np.int64)
    return calc_ppr_topk(indptr, indices, deg, alpha, epsilon, n_nodes, topk)


# ----------------------------------------------------------------------------
# Pallas kernel: one row tile of the attention matrix per grid step.
#   HW_full = h_full @ W           (needed for h2 logits and att @ HW)
#   HW_tile = h_tile @ W           (needed for h1 logits of this row tile)
#   e = h1 + h2_row + a_ppr * PPR_tile ; LeakyReLU ; masked softmax ; att @ HW
# ----------------------------------------------------------------------------
def _pprgat_kernel(h_tile_ref, h_full_ref, w_ref, a1_ref, a2t_ref, appr_ref,
                   ppr_ref, adj_ref, out_ref):
    w = w_ref[...]
    hw_full = jnp.dot(h_full_ref[...], w, preferred_element_type=jnp.float32)   # (N, Fout)
    hw_tile = jnp.dot(h_tile_ref[...], w, preferred_element_type=jnp.float32)   # (TM, Fout)

    h1 = jnp.dot(hw_tile, a1_ref[...], preferred_element_type=jnp.float32)      # (TM, 1)
    # Contract Fout of a2^T with Fout of HW_full -> (1, N). The transpose is
    # folded into the contraction: no hw.T materialization on the XLU.
    h2_row = lax.dot_general(
        a2t_ref[...], hw_full,
        dimension_numbers=(((1,), (1,)), ((), ())),
        preferred_element_type=jnp.float32)                                     # (1, N)

    a_ppr = appr_ref[0, 0]                                                      # SMEM scalar
    e = h1 + h2_row + a_ppr * ppr_ref[...]                                      # (TM, N)
    e = jnp.where(e > 0, e, NEG_SLOPE * e)                                      # LeakyReLU(0.2)

    # Masked softmax over dim 1. Keep the MASK_VAL formulation so the
    # all-masked-row degenerate case matches torch.softmax exactly (uniform).
    att = jnp.where(adj_ref[...] > 0, e, MASK_VAL)
    m = jnp.max(att, axis=1, keepdims=True)
    p = jnp.exp(att - m)
    s = jnp.sum(p, axis=1, keepdims=True)                                       # (TM, 1)
    inv = pl.reciprocal(s, approx=True)                                         # EUP slot
    inv = inv * (2.0 - s * inv)                                                 # one Newton step (tiny column)
    att = p * inv

    out_ref[...] = jnp.dot(att, hw_full, preferred_element_type=jnp.float32)


def _vmem_bytes(N, Fin, Fout, TM):
    """Rough per-step VMEM footprint (double-buffered inputs + temporaries)."""
    f32 = 4
    dbl = 2
    pipelined = dbl * f32 * (TM * Fin + 2 * TM * N + TM * Fout)   # h tile, ppr, adj, out
    resident = dbl * f32 * (N * Fin + Fin * Fout + 2 * Fout)      # full h, W, a1, a2t
    temps = f32 * (N * Fout + TM * Fout + 4 * TM * N)             # HW, e/att/p
    return pipelined + resident + temps


def _choose_tile(N, Fin, Fout, vmem_cap_bytes):
    """Largest multiple-of-8 divisor of N whose working set fits ~40% of VMEM."""
    if N % 8 != 0:
        return N
    budget = int(vmem_cap_bytes * 0.40)
    best = 8
    tm = 8
    while tm <= min(N, 1024):
        if N % tm == 0 and _vmem_bytes(N, Fin, Fout, tm) <= budget:
            best = tm
        tm += 8
    return best


def pprgat_pallas(h, W, a, a_ppr, adj, ppr, tile_m=None):
    h = jnp.asarray(h, jnp.float32)
    W = jnp.asarray(W, jnp.float32)
    a = jnp.asarray(a, jnp.float32)
    a_ppr = jnp.asarray(a_ppr, jnp.float32).reshape(1, 1)
    adj = jnp.asarray(adj, jnp.float32)
    ppr = jnp.asarray(ppr, jnp.float32)

    N, Fin = h.shape
    Fout = W.shape[1]
    a1 = a[:Fout, :]          # (Fout, 1)
    a2t = a[Fout:, :].T       # (1, Fout) — transposed on host, avoids in-kernel transpose

    try:
        vmem_cap = int(pltpu.get_tpu_info().vmem_capacity_bytes)
    except Exception:
        vmem_cap = 64 * 1024 * 1024   # conservative (v7x physical)

    if tile_m is None:
        tile_m = _choose_tile(N, Fin, Fout, vmem_cap)
    if N % tile_m != 0:
        tile_m = N                     # fallback: single block
    grid = (N // tile_m,)

    vmem_limit = int(min(max(2 * _vmem_bytes(N, Fin, Fout, tile_m), 32 << 20),
                         int(vmem_cap * 0.85)))

    grid_spec = pltpu.PrefetchScalarGridSpec(
        num_scalar_prefetch=0,
        grid=grid,
        in_specs=[
            pl.BlockSpec((tile_m, Fin), lambda i: (i, 0)),        # h rows of this tile
            pl.BlockSpec((N, Fin), lambda i: (0, 0)),             # h, full (resident)
            pl.BlockSpec((Fin, Fout), lambda i: (0, 0)),          # W
            pl.BlockSpec((Fout, 1), lambda i: (0, 0)),            # a1
            pl.BlockSpec((1, Fout), lambda i: (0, 0)),            # a2^T
            pl.BlockSpec((1, 1), lambda i: (0, 0),
                         memory_space=pltpu.MemorySpace.SMEM),    # a_ppr scalar
            pl.BlockSpec((tile_m, N), lambda i: (i, 0)),          # PPR row tile
            pl.BlockSpec((tile_m, N), lambda i: (i, 0)),          # adj row tile
        ],
        out_specs=pl.BlockSpec((tile_m, Fout), lambda i: (i, 0)),
    )

    return pl.pallas_call(
        _pprgat_kernel,
        out_shape=jax.ShapeDtypeStruct((N, Fout), jnp.float32),
        grid_spec=grid_spec,
        compiler_params=pltpu.CompilerParams(
            dimension_semantics=("parallel",),     # independent row tiles -> v7x 2-TC sharding
            vmem_limit_bytes=vmem_limit,
        ),
    )(h, h, W, a1, a2t, a_ppr, ppr, adj)


def pprgat_forward(h, W, a, a_ppr, adj, tile_m=None):
    """Full forward: host PPR preprocessing + Pallas attention kernel."""
    N = h.shape[0]
    ppr = compute_ppr(np.asarray(adj), N)
    return pprgat_pallas(h, W, a, a_ppr, adj, ppr, tile_m=tile_m)


# ----------------------------------------------------------------------------
# Reference (numpy) for correctness checking.
# ----------------------------------------------------------------------------
def _reference(h, W, a, a_ppr, adj, ppr):
    hw = h @ W
    Fout = W.shape[1]
    h1 = hw @ a[:Fout]
    h2 = hw @ a[Fout:]
    e = h1 + h2.T + a_ppr * ppr
    e = np.where(e > 0, e, NEG_SLOPE * e)
    att = np.where(adj > 0, e, -9e15)
    att = att - att.max(1, keepdims=True)
    p = np.exp(att)
    att = p / p.sum(1, keepdims=True)
    return att @ hw


def xavier_uniform(key, shape, gain=1.414):
    # matches torch._calculate_fan_in_and_fan_out for 2D tensors
    fan_in, fan_out = shape[1], shape[0]
    limit = gain * np.sqrt(6.0 / (fan_in + fan_out))
    return jax.random.uniform(key, shape, jnp.float32, -limit, limit)


if __name__ == "__main__":
    N, Fin, Fout = 16, 12, 8   # small shapes: n_nodes=16, in_features=12, out_features=8

    key = jax.random.PRNGKey(0)
    k_h, k_adj, k_w, k_a, k_ap = jax.random.split(key, 5)

    h = jax.random.normal(k_h, (N, Fin), jnp.float32)

    # symmetric binary adjacency with self loops (deg >= 1 everywhere)
    A = (np.asarray(jax.random.uniform(k_adj, (N, N))) < 0.3).astype(np.float32)
    A = np.maximum(A, A.T)
    np.fill_diagonal(A, 1.0)
    adj = jnp.asarray(A)

    # deterministic parameter init (xavier_uniform, gain=1.414 as in the module)
    W = xavier_uniform(k_w, (Fin, Fout))
    a = xavier_uniform(k_a, (2 * Fout, 1))
    a_ppr = xavier_uniform(k_ap, (1, 1))

    ppr = compute_ppr(A, N)

    # tile_m=8 -> grid of 2 row tiles to exercise the pipelined path at small N
    out = pprgat_pallas(h, W, a, a_ppr, adj, ppr, tile_m=8)
    out = jax.block_until_ready(out)

    ref = _reference(np.asarray(h), np.asarray(W), np.asarray(a),
                     np.asarray(a_ppr), A, ppr)
    assert out.shape == (N, Fout)
    assert np.allclose(np.asarray(out), ref, rtol=1e-3, atol=1e-3), "mismatch vs reference"

    print("KERNEL_OK")
</pallas_src>

<mosaic_0001>
module attributes {stable_mosaic.version = 11 : i64} {
  func.func @_pprgat_kernel(%arg0: i32, %arg1: memref<8x12xf32, #tpu.memory_space<vmem>>, %arg2: memref<16x12xf32, #tpu.memory_space<vmem>>, %arg3: memref<12x8xf32, #tpu.memory_space<vmem>>, %arg4: memref<8x1xf32, #tpu.memory_space<vmem>>, %arg5: memref<1x8xf32, #tpu.memory_space<vmem>>, %arg6: memref<1x1xf32, #tpu.memory_space<smem>>, %arg7: memref<8x16xf32, #tpu.memory_space<vmem>>, %arg8: memref<8x16xf32, #tpu.memory_space<vmem>>, %arg9: memref<8x8xf32, #tpu.memory_space<vmem>>) attributes {dimension_semantics = [#tpu.dimension_semantics<parallel>], iteration_bounds = array<i64: 2>, scalar_prefetch = 0 : i64, scratch_operands = 0 : i64, tpu.core_type = #tpu.core_type<tc>, window_params = [{transform_indices = @transform_0, window_bounds = array<i64: 8, 12>}, {pipeline_mode = #tpu.pipeline_mode<synchronous>, transform_indices = @transform_1, window_bounds = array<i64: 16, 12>}, {pipeline_mode = #tpu.pipeline_mode<synchronous>, transform_indices = @transform_2, window_bounds = array<i64: 12, 8>}, {pipeline_mode = #tpu.pipeline_mode<synchronous>, transform_indices = @transform_3, window_bounds = array<i64: 8, 1>}, {pipeline_mode = #tpu.pipeline_mode<synchronous>, transform_indices = @transform_4, window_bounds = array<i64: 1, 8>}, {transform_indices = @transform_5, window_bounds = array<i64: 1, 1>}, {transform_indices = @transform_6, window_bounds = array<i64: 8, 16>}, {transform_indices = @transform_7, window_bounds = array<i64: 8, 16>}, {transform_indices = @transform_8, window_bounds = array<i64: 8, 8>}]} {
    %c0 = arith.constant 0 : index
    %c0_0 = arith.constant 0 : index
    %0 = vector.load %arg3[%c0, %c0_0] : memref<12x8xf32, #tpu.memory_space<vmem>>, vector<12x8xf32>
    %c0_1 = arith.constant 0 : index
    %c0_2 = arith.constant 0 : index
    %1 = vector.load %arg2[%c0_1, %c0_2] : memref<16x12xf32, #tpu.memory_space<vmem>>, vector<16x12xf32>
    %cst = arith.constant dense<0.000000e+00> : vector<16x8xf32>
    %2 = tpu.matmul %1, %0, %cst {dimension_numbers = #tpu.dot_dimension_numbers<[1], [0], [0], [1], [0, 0, 1, 1], [], []>} : vector<16x12xf32>, vector<12x8xf32>, vector<16x8xf32> -> vector<16x8xf32>
    %c0_3 = arith.constant 0 : index
    %c0_4 = arith.constant 0 : index
    %3 = vector.load %arg1[%c0_3, %c0_4] : memref<8x12xf32, #tpu.memory_space<vmem>>, vector<8x12xf32>
    %cst_5 = arith.constant dense<0.000000e+00> : vector<8x8xf32>
    %4 = tpu.matmul %3, %0, %cst_5 {dimension_numbers = #tpu.dot_dimension_numbers<[1], [0], [0], [1], [0, 0, 1, 1], [], []>} : vector<8x12xf32>, vector<12x8xf32>, vector<8x8xf32> -> vector<8x8xf32>
    %c0_6 = arith.constant 0 : index
    %c0_7 = arith.constant 0 : index
    %5 = vector.load %arg4[%c0_6, %c0_7] : memref<8x1xf32, #tpu.memory_space<vmem>>, vector<8x1xf32>
    %cst_8 = arith.constant dense<0.000000e+00> : vector<8x1xf32>
    %6 = tpu.matmul %4, %5, %cst_8 {dimension_numbers = #tpu.dot_dimension_numbers<[1], [0], [0], [1], [0, 0, 1, 1], [], []>} : vector<8x8xf32>, vector<8x1xf32>, vector<8x1xf32> -> vector<8x1xf32>
    %c0_9 = arith.constant 0 : index
    %c0_10 = arith.constant 0 : index
    %7 = vector.load %arg5[%c0_9, %c0_10] : memref<1x8xf32, #tpu.memory_space<vmem>>, vector<1x8xf32>
    %cst_11 = arith.constant dense<0.000000e+00> : vector<1x16xf32>
    %8 = tpu.matmul %7, %2, %cst_11 {dimension_numbers = #tpu.dot_dimension_numbers<[1], [1], [0], [0], [0, 0, 1, 0], [], []>} : vector<1x8xf32>, vector<16x8xf32>, vector<1x16xf32> -> vector<1x16xf32>
    %c0_12 = arith.constant 0 : index
    %c0_13 = arith.constant 0 : index
    %9 = memref.load %arg6[%c0_12, %c0_13] : memref<1x1xf32, #tpu.memory_space<smem>>
    %10 = vector.broadcast %6 : vector<8x1xf32> to vector<8x16xf32>
    %11 = vector.broadcast %8 : vector<1x16xf32> to vector<8x16xf32>
    %12 = arith.addf %10, %11 : vector<8x16xf32>
    %c0_14 = arith.constant 0 : index
    %c0_15 = arith.constant 0 : index
    %13 = vector.load %arg7[%c0_14, %c0_15] : memref<8x16xf32, #tpu.memory_space<vmem>>, vector<8x16xf32>
    %14 = vector.broadcast %9 : f32 to vector<8x16xf32>
    %15 = arith.mulf %14, %13 : vector<8x16xf32>
    %16 = arith.addf %12, %15 : vector<8x16xf32>
    %cst_16 = arith.constant 0.000000e+00 : f32
    %17 = vector.broadcast %cst_16 : f32 to vector<8x16xf32>
    %18 = arith.cmpf ogt, %16, %17 : vector<8x16xf32>
    %cst_17 = arith.constant 2.000000e-01 : f32
    %19 = vector.broadcast %cst_17 : f32 to vector<8x16xf32>
    %20 = arith.mulf %19, %16 : vector<8x16xf32>
    %21 = arith.select %18, %16, %20 : vector<8x16xi1>, vector<8x16xf32>
    %c0_18 = arith.constant 0 : index
    %c0_19 = arith.constant 0 : index
    %22 = vector.load %arg8[%c0_18, %c0_19] : memref<8x16xf32, #tpu.memory_space<vmem>>, vector<8x16xf32>
    %cst_20 = arith.constant 0.000000e+00 : f32
    %23 = vector.broadcast %cst_20 : f32 to vector<8x16xf32>
    %24 = arith.cmpf ogt, %22, %23 : vector<8x16xf32>
    %cst_21 = arith.constant -9.000000e+15 : f32
    %25 = vector.broadcast %cst_21 : f32 to vector<8x16xf32>
    %26 = arith.select %24, %21, %25 : vector<8x16xi1>, vector<8x16xf32>
    %cst_22 = arith.constant dense<0xFF800000> : vector<8xf32>
    %27 = vector.multi_reduction <maximumf>, %26, %cst_22 [1] : vector<8x16xf32> to vector<8xf32>
    %28 = vector.shape_cast %27 : vector<8xf32> to vector<8x1xf32>
    %29 = vector.broadcast %28 : vector<8x1xf32> to vector<8x16xf32>
    %30 = arith.subf %26, %29 : vector<8x16xf32>
    %31 = math.exp %30 : vector<8x16xf32>
    %cst_23 = arith.constant dense<0.000000e+00> : vector<8xf32>
    %32 = vector.multi_reduction <add>, %31, %cst_23 [1] : vector<8x16xf32> to vector<8xf32>
    %33 = vector.shape_cast %32 : vector<8xf32> to vector<8x1xf32>
    %34 = tpu.reciprocal %33 {approx = true} : vector<8x1xf32> -> vector<8x1xf32>
    %35 = arith.mulf %33, %34 : vector<8x1xf32>
    %cst_24 = arith.constant 2.000000e+00 : f32
    %36 = vector.broadcast %cst_24 : f32 to vector<8x1xf32>
    %37 = arith.subf %36, %35 : vector<8x1xf32>
    %38 = arith.mulf %34, %37 : vector<8x1xf32>
    %39 = vector.broadcast %38 : vector<8x1xf32> to vector<8x16xf32>
    %40 = arith.mulf %31, %39 : vector<8x16xf32>
    %cst_25 = arith.constant dense<0.000000e+00> : vector<8x8xf32>
    %41 = tpu.matmul %40, %2, %cst_25 {dimension_numbers = #tpu.dot_dimension_numbers<[1], [0], [0], [1], [0, 0, 1, 1], [], []>} : vector<8x16xf32>, vector<16x8xf32>, vector<8x8xf32> -> vector<8x8xf32>
    %c0_26 = arith.constant 0 : index
    %c0_27 = arith.constant 0 : index
    %42 = vector.load %arg9[%c0_26, %c0_27] : memref<8x8xf32, #tpu.memory_space<vmem>>, vector<8x8xf32>
    tpu.vector_store %arg9[%c0_26, %c0_27], %41 {strides = array<i32>} : memref<8x8xf32, #tpu.memory_space<vmem>>, vector<8x8xf32>,
    return
  }
  func.func @transform_0(%arg0: i32) -> (i32, i32) {
    %c0_i32 = arith.constant 0 : i32
    %c0_i32_0 = arith.constant 0 : i32
    return %arg0, %c0_i32 : i32, i32
  }
  func.func @transform_1(%arg0: i32) -> (i32, i32) {
    %c0_i32 = arith.constant 0 : i32
    %c0_i32_0 = arith.constant 0 : i32
    %c0_i32_1 = arith.constant 0 : i32
    return %c0_i32, %c0_i32_0 : i32, i32
  }
  func.func @transform_2(%arg0: i32) -> (i32, i32) {
    %c0_i32 = arith.constant 0 : i32
    %c0_i32_0 = arith.constant 0 : i32
    %c0_i32_1 = arith.constant 0 : i32
    return %c0_i32, %c0_i32_0 : i32, i32
  }
  func.func @transform_3(%arg0: i32) -> (i32, i32) {
    %c0_i32 = arith.constant 0 : i32
    %c0_i32_0 = arith.constant 0 : i32
    %c0_i32_1 = arith.constant 0 : i32
    return %c0_i32, %c0_i32_0 : i32, i32
  }
  func.func @transform_4(%arg0: i32) -> (i32, i32) {
    %c0_i32 = arith.constant 0 : i32
    %c0_i32_0 = arith.constant 0 : i32
    %c0_i32_1 = arith.constant 0 : i32
    return %c0_i32, %c0_i32_0 : i32, i32
  }
  func.func @transform_5(%arg0: i32) -> (i32, i32) {
    %c0_i32 = arith.constant 0 : i32
    %c0_i32_0 = arith.constant 0 : i32
    %c0_i32_1 = arith.constant 0 : i32
    return %c0_i32, %c0_i32_0 : i32, i32
  }
  func.func @transform_6(%arg0: i32) -> (i32, i32) {
    %c0_i32 = arith.constant 0 : i32
    %c0_i32_0 = arith.constant 0 : i32
    return %arg0, %c0_i32 : i32, i32
  }
  func.func @transform_7(%arg0: i32) -> (i32, i32) {
    %c0_i32 = arith.constant 0 : i32
    %c0_i32_0 = arith.constant 0 : i32
    return %arg0, %c0_i32 : i32, i32
  }
  func.func @transform_8(%arg0: i32) -> (i32, i32) {
    %c0_i32 = arith.constant 0 : i32
    %c0_i32_0 = arith.constant 0 : i32
    return %arg0, %c0_i32 : i32, i32
  }
}

</mosaic_0001>

<llo_original>
// kernel: tpu_custom_call.1
$region0: #{tpu_custom_call.1}
  #allocation0 [shape = 'u32[]', space=smem, size = 0x4, offset = 0x4, fixed_abs, tag = 'smem constant byte address 0x4 - core index']
  #allocation1 [shape = 'u32[144,128]{1,0:T(1,128)}', space=vmem, size = 0x12000, scoped, tag = 'internal scratch']
  #allocation2 [shape = 'f32[1,1]{1,0:T(1,128)S(6)}', space=smem, size = 0x200, scoped, tag = 'scoped memory for tpu_custom_call.1']
  %s0 = inlined_call_operand.vmem [shape: f32[16,12], index: 0, kind: input, shape index: {}]
  %s1 = inlined_call_operand.vmem [shape: f32[16,12], index: 1, kind: input, shape index: {}]
  %s2 = inlined_call_operand.vmem [shape: f32[12,8], index: 2, kind: input, shape index: {}]
  %s3 = inlined_call_operand.vmem [shape: f32[8,1], index: 3, kind: input, shape index: {}]
  %s4 = inlined_call_operand.vmem [shape: f32[1,8], index: 4, kind: input, shape index: {}]
  %s5 = inlined_call_operand.<no memory space> [shape: f32[1,1], index: 5, kind: input, shape index: {}]
  %s6 = inlined_call_operand.hbm [shape: f32[16,16], index: 6, kind: input, shape index: {}]
  %s7 = inlined_call_operand.hbm [shape: f32[16,16], index: 7, kind: input, shape index: {}]
  %s8 = inlined_call_operand.vmem [shape: f32[16,8], index: 8, kind: output, shape index: {}]
  %s9 = sld [smem:[#allocation0]]
  $region73: #{tpu_custom_call.1} parent=0
    _
  %s11 = ssub.s32 1, %s9
  %s12 = scalar_select 0, %s11, %s9
  %13 = sst [smem:[#allocation2]] %s5
  $region1: #{tpu_custom_call.1} parent=0
    #allocation3 [shape = 'u8[8192]{0}', space=vmem, size = 0x2000, scoped, tag = 'input window, operand 6']
    #allocation4 [shape = 's32[2]{0}', space=sflag, size = 0x8, scoped, tag = 'scoped memory for tpu_custom_call.1']
    #allocation5 [shape = 'u8[8192]{0}', space=vmem, size = 0x2000, scoped, tag = 'input window, operand 7']
    #allocation6 [shape = 's32[2]{0}', space=sflag, size = 0x8, scoped, tag = 'scoped memory for tpu_custom_call.1']
    %14 = vsyncpa [#allocation4], 0
    %s15 = scalar_lea.sflag [#allocation4], 1
    %16 = vsyncpa %s15, 0
    %17 = vsyncpa [#allocation6], 0
    %s18 = scalar_lea.sflag [#allocation6], 1
    %19 = vsyncpa %s18, 0
    loop: start=0, step=1, limit=4
    $region2: #{tpu_custom_call.1} parent=1 // loop_pre_header
      _
    $region3: #{tpu_custom_call.1} parent=1 // loop_header
      %s21 = sphi 0, %s25
      %p22 = scmp.ge.s32.totalorder %s21, 4
      %s31 = sphi 0, %s33
      %s34 = sphi 0, %s31
      %s35 = sphi 0, %s34
      %s51 = sphi 0, %s35
      %s55 = sphi 0, %s55
      %s57 = sphi 0, %s55
      %s58 = sphi 0, %s57
      %s72 = sphi 0, %s58
      %s76 = sphi 0, %s76
      %s78 = sphi 0, %s76
      %s79 = sphi 0, %s78
      %s93 = sphi 0, %s79
      %s97 = sphi 0, %s97
      %s99 = sphi 0, %s97
      %s100 = sphi 0, %s99
      %s114 = sphi 0, %s100
      %s118 = sphi 0, %s118
      %s120 = sphi 0, %s118
      %s121 = sphi 0, %s120
      %s135 = sphi 0, %s121
      %s139 = sphi 0, %s139
      %s141 = sphi 0, %s139
      %s142 = sphi 0, %s141
      %s156 = sphi 0, %s142
      %s162 = sphi 0, %s164
      %s165 = sphi 0, %s162
      %s166 = sphi 0, %s165
      %s182 = sphi 0, %s166
      %s188 = sphi 0, %s190
      %s191 = sphi 0, %s188
      %s192 = sphi 0, %s191
      %s208 = sphi 0, %s192
      %s214 = sphi 0, %s216
      %s217 = sphi 0, %s214
      %s218 = sphi 0, %s217
      %s234 = sphi 0, %s218
    $region4: #{tpu_custom_call.1} parent=1 // loop_header_branch
      %24 = sbr.rel (%p22) target = $region8
    $region5: #{tpu_custom_call.1} parent=1 // loop_body
      %s26 = ssub.s32 %s21, 1
      %s27 = ssub.s32 %s21, 2
      %s28 = sadd.s32 %s21, 1
      %s29 = ssub.s32 %s21, %s28
      %p30 = scmp.eq.s32.totalorder %s29, 0
      %s32 = sadd.s32 %s31, 1
      %s33 = scalar_select %p30, %s31, %s32
      %p36 = pneg %p30
      %p37 = scmp.eq.s32.totalorder %s21, 1
      %p38 = por %p36, %p37
      %p39 = scmp.ne.s32.totalorder %s31, %s34
      %p40 = scmp.eq.s32.totalorder %s21, 0
      %p41 = por %p39, %p40
      %p42 = scmp.ne.s32.totalorder %s31, %s34
      %p43 = scmp.eq.s32.totalorder %s26, 1
      %p44 = por %p42, %p43
      %p45 = scmp.ne.s32.totalorder %s34, %s35
      %p46 = scmp.eq.s32.totalorder %s26, 0
      %p47 = por %p45, %p46
      %p48 = scmp.ne.s32.totalorder %s34, %s35
      %p49 = scmp.eq.s32.totalorder %s27, 1
      %p50 = por %p48, %p49
      %p52 = scmp.ne.s32.totalorder %s35, %s51
      %p53 = scmp.eq.s32.totalorder %s27, 0
      %p54 = por %p52, %p53
      %s56 = sadd.s32 %s55, 1
      %p59 = scmp.eq.s32.totalorder %s21, 1
      %p60 = scmp.ne.s32.totalorder %s55, %s57
      %p61 = scmp.eq.s32.totalorder %s21, 0
      %p62 = por %p60, %p61
      %p63 = scmp.ne.s32.totalorder %s55, %s57
      %p64 = scmp.eq.s32.totalorder %s26, 1
      %p65 = por %p63, %p64
      %p66 = scmp.ne.s32.totalorder %s57, %s58
      %p67 = scmp.eq.s32.totalorder %s26, 0
      %p68 = por %p66, %p67
      %p69 = scmp.ne.s32.totalorder %s57, %s58
      %p70 = scmp.eq.s32.totalorder %s27, 1
      %p71 = por %p69, %p70
      %p73 = scmp.ne.s32.totalorder %s58, %s72
      %p74 = scmp.eq.s32.totalorder %s27, 0
      %p75 = por %p73, %p74
      %s77 = sadd.s32 %s76, 1
      %p80 = scmp.eq.s32.totalorder %s21, 1
      %p81 = scmp.ne.s32.totalorder %s76, %s78
      %p82 = scmp.eq.s32.totalorder %s21, 0
      %p83 = por %p81, %p82
      %p84 = scmp.ne.s32.totalorder %s76, %s78
      %p85 = scmp.eq.s32.totalorder %s26, 1
      %p86 = por %p84, %p85
      %p87 = scmp.ne.s32.totalorder %s78, %s79
      %p88 = scmp.eq.s32.totalorder %s26, 0
      %p89 = por %p87, %p88
      %p90 = scmp.ne.s32.totalorder %s78, %s79
      %p91 = scmp.eq.s32.totalorder %s27, 1
      %p92 = por %p90, %p91
      %p94 = scmp.ne.s32.totalorder %s79, %s93
      %p95 = scmp.eq.s32.totalorder %s27, 0
      %p96 = por %p94, %p95
      %s98 = sadd.s32 %s97, 1
      %p101 = scmp.eq.s32.totalorder %s21, 1
      %p102 = scmp.ne.s32.totalorder %s97, %s99
      %p103 = scmp.eq.s32.totalorder %s21, 0
      %p104 = por %p102, %p103
      %p105 = scmp.ne.s32.totalorder %s97, %s99
      %p106 = scmp.eq.s32.totalorder %s26, 1
      %p107 = por %p105, %p106
      %p108 = scmp.ne.s32.totalorder %s99, %s100
      %p109 = scmp.eq.s32.totalorder %s26, 0
      %p110 = por %p108, %p109
      %p111 = scmp.ne.s32.totalorder %s99, %s100
      %p112 = scmp.eq.s32.totalorder %s27, 1
      %p113 = por %p111, %p112
      %p115 = scmp.ne.s32.totalorder %s100, %s114
      %p116 = scmp.eq.s32.totalorder %s27, 0
      %p117 = por %p115, %p116
      %s119 = sadd.s32 %s118, 1
      %p122 = scmp.eq.s32.totalorder %s21, 1
      %p123 = scmp.ne.s32.totalorder %s118, %s120
      %p124 = scmp.eq.s32.totalorder %s21, 0
      %p125 = por %p123, %p124
      %p126 = scmp.ne.s32.totalorder %s118, %s120
      %p127 = scmp.eq.s32.totalorder %s26, 1
      %p128 = por %p126, %p127
      %p129 = scmp.ne.s32.totalorder %s120, %s121
      %p130 = scmp.eq.s32.totalorder %s26, 0
      %p131 = por %p129, %p130
      %p132 = scmp.ne.s32.totalorder %s120, %s121
      %p133 = scmp.eq.s32.totalorder %s27, 1
      %p134 = por %p132, %p133
      %p136 = scmp.ne.s32.totalorder %s121, %s135
      %p137 = scmp.eq.s32.totalorder %s27, 0
      %p138 = por %p136, %p137
      %s140 = sadd.s32 %s139, 1
      %p143 = scmp.eq.s32.totalorder %s21, 1
      %p144 = scmp.ne.s32.totalorder %s139, %s141
      %p145 = scmp.eq.s32.totalorder %s21, 0
      %p146 = por %p144, %p145
      %p147 = scmp.ne.s32.totalorder %s139, %s141
      %p148 = scmp.eq.s32.totalorder %s26, 1
      %p149 = por %p147, %p148
      %p150 = scmp.ne.s32.totalorder %s141, %s142
      %p151 = scmp.eq.s32.totalorder %s26, 0
      %p152 = por %p150, %p151
      %p153 = scmp.ne.s32.totalorder %s141, %s142
      %p154 = scmp.eq.s32.totalorder %s27, 1
      %p155 = por %p153, %p154
      %p157 = scmp.ne.s32.totalorder %s142, %s156
      %p158 = scmp.eq.s32.totalorder %s27, 0
      %p159 = por %p157, %p158
      %s160 = ssub.s32 %s21, %s28
      %p161 = scmp.eq.s32.totalorder %s160, 0
      %s163 = sadd.s32 %s162, 1
      %s164 = scalar_select %p161, %s162, %s163
      %p167 = pneg %p161
      %p168 = scmp.eq.s32.totalorder %s21, 1
      %p169 = por %p167, %p168
      %p170 = scmp.ne.s32.totalorder %s162, %s165
      %p171 = scmp.eq.s32.totalorder %s21, 0
      %p172 = por %p170, %p171
      %p173 = scmp.ne.s32.totalorder %s162, %s165
      %p174 = scmp.eq.s32.totalorder %s26, 1
      %p175 = por %p173, %p174
      %p176 = scmp.ne.s32.totalorder %s165, %s166
      %p177 = scmp.eq.s32.totalorder %s26, 0
      %p178 = por %p176, %p177
      %p179 = scmp.ne.s32.totalorder %s165, %s166
      %p180 = scmp.eq.s32.totalorder %s27, 1
      %p181 = por %p179, %p180
      %p183 = scmp.ne.s32.totalorder %s166, %s182
      %p184 = scmp.eq.s32.totalorder %s27, 0
      %p185 = por %p183, %p184
      %s186 = ssub.s32 %s21, %s28
      %p187 = scmp.eq.s32.totalorder %s186, 0
      %s189 = sadd.s32 %s188, 1
      %s190 = scalar_select %p187, %s188, %s189
      %p193 = pneg %p187
      %p194 = scmp.eq.s32.totalorder %s21, 1
      %p195 = por %p193, %p194
      %p196 = scmp.ne.s32.totalorder %s188, %s191
      %p197 = scmp.eq.s32.totalorder %s21, 0
      %p198 = por %p196, %p197
      %p199 = scmp.ne.s32.totalorder %s188, %s191
      %p200 = scmp.eq.s32.totalorder %s26, 1
      %p201 = por %p199, %p200
      %p202 = scmp.ne.s32.totalorder %s191, %s192
      %p203 = scmp.eq.s32.totalorder %s26, 0
      %p204 = por %p202, %p203
      %p205 = scmp.ne.s32.totalorder %s191, %s192
      %p206 = scmp.eq.s32.totalorder %s27, 1
      %p207 = por %p205, %p206
      %p209 = scmp.ne.s32.totalorder %s192, %s208
      %p210 = scmp.eq.s32.totalorder %s27, 0
      %p211 = por %p209, %p210
      %s212 = ssub.s32 %s21, %s28
      %p213 = scmp.eq.s32.totalorder %s212, 0
      %s215 = sadd.s32 %s214, 1
      %s216 = scalar_select %p213, %s214, %s215
      %p219 = pneg %p213
      %p220 = scmp.eq.s32.totalorder %s21, 1
      %p221 = por %p219, %p220
      %p222 = scmp.ne.s32.totalorder %s214, %s217
      %p223 = scmp.eq.s32.totalorder %s21, 0
      %p224 = por %p222, %p223
      %p225 = scmp.ne.s32.totalorder %s214, %s217
      %p226 = scmp.eq.s32.totalorder %s26, 1
      %p227 = por %p225, %p226
      %p228 = scmp.ne.s32.totalorder %s217, %s218
      %p229 = scmp.eq.s32.totalorder %s26, 0
      %p230 = por %p228, %p229
      %p231 = scmp.ne.s32.totalorder %s217, %s218
      %p232 = scmp.eq.s32.totalorder %s27, 1
      %p233 = por %p231, %p232
      %p235 = scmp.ne.s32.totalorder %s218, %s234
      %p236 = scmp.eq.s32.totalorder %s27, 0
      %p237 = por %p235, %p236
      %p238 = scmp.le.s32.totalorder 1, %s21
      %p239 = scmp.lt.s32.totalorder %s21, 3
      %p240 = pnand %p238, %p239
      %p241 = pneg %p240
      // Predicated region
      $region9: #{tpu_custom_call.1} parent=5 // pred_check
        _
      $region10: #{tpu_custom_call.1} parent=5 // pred_check_branch
        %243 = sbr.rel (%p240) target = $region12
      $region11: #{tpu_custom_call.1} parent=5 // pred_region
        %s244 = ssub.s32 %s21, 1
        // Predicated region
        $region13: #{tpu_custom_call.1} parent=11 // pred_check
          %p245 = pneg %p68
        $region14: #{tpu_custom_call.1} parent=11 // pred_check_branch
          %247 = sbr.rel (%p245) target = $region16
        $region15: #{tpu_custom_call.1} parent=11 // pred_region
          _
        $region16: #{tpu_custom_call.1} parent=11 // pred_fallthru
          _
        // Predicated region
        $region17: #{tpu_custom_call.1} parent=11 // pred_check
          %p248 = pneg %p89
        $region18: #{tpu_custom_call.1} parent=11 // pred_check_branch
          %250 = sbr.rel (%p248) target = $region20
        $region19: #{tpu_custom_call.1} parent=11 // pred_region
          _
        $region20: #{tpu_custom_call.1} parent=11 // pred_fallthru
          _
        // Predicated region
        $region21: #{tpu_custom_call.1} parent=11 // pred_check
          %p251 = pneg %p110
        $region22: #{tpu_custom_call.1} parent=11 // pred_check_branch
          %253 = sbr.rel (%p251) target = $region24
        $region23: #{tpu_custom_call.1} parent=11 // pred_region
          _
        $region24: #{tpu_custom_call.1} parent=11 // pred_fallthru
          _
        // Predicated region
        $region25: #{tpu_custom_call.1} parent=11 // pred_check
          %p254 = pneg %p131
        $region26: #{tpu_custom_call.1} parent=11 // pred_check_branch
          %256 = sbr.rel (%p254) target = $region28
        $region27: #{tpu_custom_call.1} parent=11 // pred_region
          _
        $region28: #{tpu_custom_call.1} parent=11 // pred_fallthru
          _
        // Predicated region
        $region29: #{tpu_custom_call.1} parent=11 // pred_check
          %p257 = pneg %p152
        $region30: #{tpu_custom_call.1} parent=11 // pred_check_branch
          %259 = sbr.rel (%p257) target = $region32
        $region31: #{tpu_custom_call.1} parent=11 // pred_region
          _
        $region32: #{tpu_custom_call.1} parent=11 // pred_fallthru
          _
      $region12: #{tpu_custom_call.1} parent=5 // pred_fallthru
        _
      %p260 = scmp.lt.s32.totalorder %s21, 2
      // Predicated region
      $region33: #{tpu_custom_call.1} parent=5 // pred_check
        %p261 = pneg %p260
      $region34: #{tpu_custom_call.1} parent=5 // pred_check_branch
        %263 = sbr.rel (%p261) target = $region36
      $region35: #{tpu_custom_call.1} parent=5 // pred_region
        // Predicated region
        $region37: #{tpu_custom_call.1} parent=35 // pred_check
          %p264 = pneg %p41
        $region38: #{tpu_custom_call.1} parent=35 // pred_check_branch
          %266 = sbr.rel (%p264) target = $region40
        $region39: #{tpu_custom_call.1} parent=35 // pred_region
          %p267 = scmp.lt.s32.totalorder %s21, 1
          %s268 = scalar_select %p267, %s21, 1
          %s269 = smul.addr %s268, 8
          %s270 = scalar_lea.vmem %s0, %s269
        $region40: #{tpu_custom_call.1} parent=35 // pred_fallthru
          _
        // Predicated region
        $region41: #{tpu_custom_call.1} parent=35 // pred_check
          %p271 = pneg %p172
        $region42: #{tpu_custom_call.1} parent=35 // pred_check_branch
          %273 = sbr.rel (%p271) target = $region44
        $region43: #{tpu_custom_call.1} parent=35 // pred_region
          %s274 = sand.u32 %s162, 1
          %s275 = scalar_lea.sflag [#allocation4], %s274
          %s276 = sand.u32 %s162, 1
          %s277 = smul.addr %s276, 8
          %s278 = scalar_lea.vmem [#allocation3], %s277
          %s280 = ssub.s32 128, 128
          %281 = vsyncadd %s275, %s280
          %s282 = smul.addr %s21, 128
          %s283 = scalar_lea.hbm %s6, %s282
          %s285 = sshll.u32 %s278, 4
          %s286 = int_to_ptr.vmem [resolvable:$true] %s285
          %288 = dma.hbm_to_vmem [thread:$0]  %s283, 128, %s286, %s275
        $region44: #{tpu_custom_call.1} parent=35 // pred_fallthru
          _
        // Predicated region
        $region45: #{tpu_custom_call.1} parent=35 // pred_check
          %p289 = pneg %p198
        $region46: #{tpu_custom_call.1} parent=35 // pred_check_branch
          %291 = sbr.rel (%p289) target = $region48
        $region47: #{tpu_custom_call.1} parent=35 // pred_region
          %s292 = sand.u32 %s188, 1
          %s293 = scalar_lea.sflag [#allocation6], %s292
          %s294 = sand.u32 %s188, 1
          %s295 = smul.addr %s294, 8
          %s296 = scalar_lea.vmem [#allocation5], %s295
          %s298 = ssub.s32 128, 128
          %299 = vsyncadd %s293, %s298
          %s300 = smul.addr %s21, 128
          %s301 = scalar_lea.hbm %s7, %s300
          %s303 = sshll.u32 %s296, 4
          %s304 = int_to_ptr.vmem [resolvable:$true] %s303
          %306 = dma.hbm_to_vmem [thread:$0]  %s301, 128, %s304, %s293
        $region48: #{tpu_custom_call.1} parent=35 // pred_fallthru
          _
      $region36: #{tpu_custom_call.1} parent=5 // pred_fallthru
        _
      %p307 = scmp.le.s32.totalorder 1, %s21
      %p308 = scmp.lt.s32.totalorder %s21, 3
      %p309 = pnand %p307, %p308
      %p310 = pneg %p309
      // Predicated region
      $region49: #{tpu_custom_call.1} parent=5 // pred_check
        _
      $region50: #{tpu_custom_call.1} parent=5 // pred_check_branch
        %312 = sbr.rel (%p309) target = $region52
      $region51: #{tpu_custom_call.1} parent=5 // pred_region
        %s313 = ssub.s32 %s21, 1
        %s314 = sand.u32 %s165, 1
        %s315 = scalar_lea.sflag [#allocation4], %s314
        %s316 = sand.u32 %s165, 1
        %s317 = smul.addr %s316, 8
        %s318 = scalar_lea.vmem [#allocation3], %s317
        // Predicated region
        $region53: #{tpu_custom_call.1} parent=51 // pred_check
          %p319 = pneg %p178
        $region54: #{tpu_custom_call.1} parent=51 // pred_check_branch
          %321 = sbr.rel (%p319) target = $region56
        $region55: #{tpu_custom_call.1} parent=51 // pred_region
          %322 = dma.done %s315, 128
        $region56: #{tpu_custom_call.1} parent=51 // pred_fallthru
          _
        %s323 = sand.u32 %s191, 1
        %s324 = scalar_lea.sflag [#allocation6], %s323
        %s325 = sand.u32 %s191, 1
        %s326 = smul.addr %s325, 8
        %s327 = scalar_lea.vmem [#allocation5], %s326
        // Predicated region
        $region57: #{tpu_custom_call.1} parent=51 // pred_check
          %p328 = pneg %p204
        $region58: #{tpu_custom_call.1} parent=51 // pred_check_branch
          %330 = sbr.rel (%p328) target = $region60
        $region59: #{tpu_custom_call.1} parent=51 // pred_region
          %331 = dma.done %s324, 128
        $region60: #{tpu_custom_call.1} parent=51 // pred_fallthru
          _
        %p332 = scmp.lt.s32.totalorder %s26, 1
        %s333 = scalar_select %p332, %s26, 1
        %s334 = smul.addr %s333, 8
        %s335 = scalar_lea.vmem %s0, %s334
        %p336 = pneg %p47
        %p337 = pneg %p44
        %p338 = pneg %p68
        %p339 = pneg %p65
        %p340 = pneg %p89
        %p341 = pneg %p86
        %p342 = pneg %p110
        %p343 = pneg %p107
        %p344 = pneg %p131
        %p345 = pneg %p128
        %p346 = pneg %p152
        %p347 = pneg %p149
        %s348 = sand.u32 %s165, 1
        %s349 = scalar_lea.sflag [#allocation4], %s348
        %s350 = sand.u32 %s165, 1
        %s351 = smul.addr %s350, 8
        %s352 = scalar_lea.vmem [#allocation3], %s351
        %p353 = pneg %p178
        %p354 = pneg %p175
        %s355 = sand.u32 %s191, 1
        %s356 = scalar_lea.sflag [#allocation6], %s355
        %s357 = sand.u32 %s191, 1
        %s358 = smul.addr %s357, 8
        %s359 = scalar_lea.vmem [#allocation5], %s358
        %p360 = pneg %p204
        %p361 = pneg %p201
        %p362 = pneg %p230
        %p363 = pneg %p227
        %p364 = scmp.lt.s32.totalorder %s26, 1
        %s365 = scalar_select %p364, %s26, 1
        %s366 = smul.addr %s365, 8
        %s367 = scalar_lea.vmem %s8, %s366
        %p368 = scmp.lt.s32.totalorder %s26, 1
        %s369 = scalar_select %p368, %s26, 1
        %s370 = smul.addr %s369, 8
        %s371 = scalar_lea.vmem %s0, %s370
        %p372 = scmp.lt.s32.totalorder %s26, 1
        %s373 = scalar_select %p372, %s26, 1
        %s374 = smul.addr %s373, 8
        %s375 = scalar_lea.vmem %s8, %s374
        %v376 = vld [vmem:[%s2] sm:$0xff]
        %v377 = vld [vmem:[%s2 + $0x8] sm:$0xf]
        %v378 = vld [vmem:[%s1] sm:$0xff]
        %v379 = vld [vmem:[%s1 + $0x8] sm:$0xff]
        %vm380 = vcmask 97280
        %v382 = vsel %vm380, %v378, 0
        %v385 = vsel %vm380, %v379, 0
        %vm387 = vcmask 1043456
        %v389 = vsel %vm387, %v377, 0
        %391 = vmatprep.subr.mxu0 0.0
        %392 = vmatpush1.msra.mxu0 0.0
        %393 = vmatprep.subr.mxu0 0.0
        %394 = vmatpush1.msra.mxu0 0.0
        %395 = vmatprep.subr.mxu0 0.0
        %396 = vmatpush1.msra.mxu0 0.0
        %397 = vmatprep.subr.mxu0 0.0
        %398 = vmatpush1.msra.mxu0 0.0
        %399 = vmatprep.subr.mxu0 0.0
        %400 = vmatpush1.msra.mxu0 0.0
        %401 = vmatprep.subr.mxu0 0.0
        %402 = vmatpush1.msra.mxu0 0.0
        %403 = vmatprep.subr.mxu0 0.0
        %404 = vmatpush1.msra.mxu0 0.0
        %405 = vmatprep.subr.mxu0 0.0
        %406 = vmatpush1.msra.mxu0 0.0
        %407 = vmatprep.subr.mxu0 0.0
        %408 = vmatpush1.msra.mxu0 0.0
        %409 = vmatprep.subr.mxu0 0.0
        %410 = vmatpush1.msra.mxu0 0.0
        %411 = vmatprep.subr.mxu0 0.0
        %412 = vmatpush1.msra.mxu0 0.0
        %413 = vmatprep.subr.mxu0 0.0
        %414 = vmatpush1.msra.mxu0 0.0
        %415 = vmatprep.subr.mxu0 0.0
        %416 = vmatpush1.msra.mxu0 0.0
        %417 = vmatprep.subr.mxu0 0.0
        %418 = vmatpush1.msra.mxu0 0.0
        %419 = vmatprep.subr.mxu0 0.0
        %420 = vmatpush1.msra.mxu0 %v389
        %421 = vmatprep.subr.mxu0 0.0
        %422 = vmatpush1.msra.mxu0 %v376
        %423 = vmatprep.subr.mxu0 0.0
        %424 = vmatpush2.msra.mxu0 0.0
        %425 = vmatprep.subr.mxu0 0.0
        %426 = vmatpush2.msra.mxu0 0.0
        %427 = vmatprep.subr.mxu0 0.0
        %428 = vmatpush2.msra.mxu0 0.0
        %429 = vmatprep.subr.mxu0 0.0
        %430 = vmatpush2.msra.mxu0 0.0
        %431 = vmatprep.subr.mxu0 0.0
        %432 = vmatpush2.msra.mxu0 0.0
        %433 = vmatprep.subr.mxu0 0.0
        %434 = vmatpush2.msra.mxu0 0.0
        %435 = vmatprep.subr.mxu0 0.0
        %436 = vmatpush2.msra.mxu0 0.0
        %437 = vmatprep.subr.mxu0 0.0
        %438 = vmatpush2.msra.mxu0 0.0
        %439 = vmatprep.subr.mxu0 0.0
        %440 = vmatpush2.msra.mxu0 0.0
        %441 = vmatprep.subr.mxu0 0.0
        %442 = vmatpush2.msra.mxu0 0.0
        %443 = vmatprep.subr.mxu0 0.0
        %444 = vmatpush2.msra.mxu0 0.0
        %445 = vmatprep.subr.mxu0 0.0
        %446 = vmatpush2.msra.mxu0 0.0
        %447 = vmatprep.subr.mxu0 0.0
        %448 = vmatpush2.msra.mxu0 0.0
        %449 = vmatprep.subr.mxu0 0.0
        %450 = vmatpush2.msra.mxu0 0.0
        %451 = vmatprep.subr.mxu0 0.0
        %452 = vmatpush2.msra.mxu0 0.0
        %453 = vmatprep.subr.mxu0 0.0
        %454 = vmatpush2.msra.mxu0 0.0
        %455 = vmatprep.mubr.f32.mxu0 0.0
        %456 = vmatmul.mubr.f32.gmra.mxu0 %v382
        %v457 = vpop.f32.mrf.mxu0
        %v458 = vadd.f32 0.0, %v457
        %v459 = vpop.f32.mrf.mxu0
        %460 = vmatprep.mubr.f32.mxu0 0.0
        %461 = vmatmul.mubr.f32.gmra.mxu0 %v385
        %v462 = vpop.f32.mrf.mxu0
        %v463 = vadd.f32 0.0, %v462
        %v464 = vpop.f32.mrf.mxu0
        %465 = vdwg.mxu0
        %v466 = vld [vmem:[%s371] sm:$0xff]
        %v468 = vsel %vm380, %v466, 0
        %470 = vmatprep.subr.mxu0 0.0
        %471 = vmatpush1.msra.mxu0 0.0
        %472 = vmatprep.subr.mxu0 0.0
        %473 = vmatpush1.msra.mxu0 0.0
        %474 = vmatprep.subr.mxu0 0.0
        %475 = vmatpush1.msra.mxu0 0.0
        %476 = vmatprep.subr.mxu0 0.0
        %477 = vmatpush1.msra.mxu0 0.0
        %478 = vmatprep.subr.mxu0 0.0
        %479 = vmatpush1.msra.mxu0 0.0
        %480 = vmatprep.subr.mxu0 0.0
        %481 = vmatpush1.msra.mxu0 0.0
        %482 = vmatprep.subr.mxu0 0.0
        %483 = vmatpush1.msra.mxu0 0.0
        %484 = vmatprep.subr.mxu0 0.0
        %485 = vmatpush1.msra.mxu0 0.0
        %486 = vmatprep.subr.mxu0 0.0
        %487 = vmatpush1.msra.mxu0 0.0
        %488 = vmatprep.subr.mxu0 0.0
        %489 = vmatpush1.msra.mxu0 0.0
        %490 = vmatprep.subr.mxu0 0.0
        %491 = vmatpush1.msra.mxu0 0.0
        %492 = vmatprep.subr.mxu0 0.0
        %493 = vmatpush1.msra.mxu0 0.0
        %494 = vmatprep.subr.mxu0 0.0
        %495 = vmatpush1.msra.mxu0 0.0
        %496 = vmatprep.subr.mxu0 0.0
        %497 = vmatpush1.msra.mxu0 0.0
        %498 = vmatprep.subr.mxu0 0.0
        %499 = vmatpush1.msra.mxu0 %v389
        %500 = vmatprep.subr.mxu0 0.0
        %501 = vmatpush1.msra.mxu0 %v376
        %502 = vmatprep.subr.mxu0 0.0
        %503 = vmatpush2.msra.mxu0 0.0
        %504 = vmatprep.subr.mxu0 0.0
        %505 = vmatpush2.msra.mxu0 0.0
        %506 = vmatprep.subr.mxu0 0.0
        %507 = vmatpush2.msra.mxu0 0.0
        %508 = vmatprep.subr.mxu0 0.0
        %509 = vmatpush2.msra.mxu0 0.0
        %510 = vmatprep.subr.mxu0 0.0
        %511 = vmatpush2.msra.mxu0 0.0
        %512 = vmatprep.subr.mxu0 0.0
        %513 = vmatpush2.msra.mxu0 0.0
        %514 = vmatprep.subr.mxu0 0.0
        %515 = vmatpush2.msra.mxu0 0.0
        %516 = vmatprep.subr.mxu0 0.0
        %517 = vmatpush2.msra.mxu0 0.0
        %518 = vmatprep.subr.mxu0 0.0
        %519 = vmatpush2.msra.mxu0 0.0
        %520 = vmatprep.subr.mxu0 0.0
        %521 = vmatpush2.msra.mxu0 0.0
        %522 = vmatprep.subr.mxu0 0.0
        %523 = vmatpush2.msra.mxu0 0.0
        %524 = vmatprep.subr.mxu0 0.0
        %525 = vmatpush2.msra.mxu0 0.0
        %526 = vmatprep.subr.mxu0 0.0
        %527 = vmatpush2.msra.mxu0 0.0
        %528 = vmatprep.subr.mxu0 0.0
        %529 = vmatpush2.msra.mxu0 0.0
        %530 = vmatprep.subr.mxu0 0.0
        %531 = vmatpush2.msra.mxu0 0.0
        %532 = vmatprep.subr.mxu0 0.0
        %533 = vmatpush2.msra.mxu0 0.0
        %534 = vmatprep.mubr.f32.mxu0 0.0
        %535 = vmatmul.mubr.f32.gmra.mxu0 %v468
        %v536 = vpop.f32.mrf.mxu0
        %v537 = vadd.f32 0.0, %v536
        %v538 = vpop.f32.mrf.mxu0
        %539 = vdwg.mxu0
        %v540 = vld [vmem:[%s3] sm:$0xff]
        %vm541 = vcmask 64512
        %v543 = vsel %vm541, %v537, 0
        %545 = vmatprep.subr.mxu0 0.0
        %546 = vmatpush1.msra.mxu0 0.0
        %547 = vmatprep.subr.mxu0 0.0
        %548 = vmatpush1.msra.mxu0 0.0
        %549 = vmatprep.subr.mxu0 0.0
        %550 = vmatpush1.msra.mxu0 0.0
        %551 = vmatprep.subr.mxu0 0.0
        %552 = vmatpush1.msra.mxu0 0.0
        %553 = vmatprep.subr.mxu0 0.0
        %554 = vmatpush1.msra.mxu0 0.0
        %555 = vmatprep.subr.mxu0 0.0
        %556 = vmatpush1.msra.mxu0 0.0
        %557 = vmatprep.subr.mxu0 0.0
        %558 = vmatpush1.msra.mxu0 0.0
        %559 = vmatprep.subr.mxu0 0.0
        %560 = vmatpush1.msra.mxu0 0.0
        %561 = vmatprep.subr.mxu0 0.0
        %562 = vmatpush1.msra.mxu0 0.0
        %563 = vmatprep.subr.mxu0 0.0
        %564 = vmatpush1.msra.mxu0 0.0
        %565 = vmatprep.subr.mxu0 0.0
        %566 = vmatpush1.msra.mxu0 0.0
        %567 = vmatprep.subr.mxu0 0.0
        %568 = vmatpush1.msra.mxu0 0.0
        %569 = vmatprep.subr.mxu0 0.0
        %570 = vmatpush1.msra.mxu0 0.0
        %571 = vmatprep.subr.mxu0 0.0
        %572 = vmatpush1.msra.mxu0 0.0
        %573 = vmatprep.subr.mxu0 0.0
        %574 = vmatpush1.msra.mxu0 0.0
        %575 = vmatprep.subr.mxu0 0.0
        %576 = vmatpush1.msra.mxu0 %v540
        %577 = vmatprep.subr.mxu0 0.0
        %578 = vmatpush2.msra.mxu0 0.0
        %579 = vmatprep.subr.mxu0 0.0
        %580 = vmatpush2.msra.mxu0 0.0
        %581 = vmatprep.subr.mxu0 0.0
        %582 = vmatpush2.msra.mxu0 0.0
        %583 = vmatprep.subr.mxu0 0.0
        %584 = vmatpush2.msra.mxu0 0.0
        %585 = vmatprep.subr.mxu0 0.0
        %586 = vmatpush2.msra.mxu0 0.0
        %587 = vmatprep.subr.mxu0 0.0
        %588 = vmatpush2.msra.mxu0 0.0
        %589 = vmatprep.subr.mxu0 0.0
        %590 = vmatpush2.msra.mxu0 0.0
        %591 = vmatprep.subr.mxu0 0.0
        %592 = vmatpush2.msra.mxu0 0.0
        %593 = vmatprep.subr.mxu0 0.0
        %594 = vmatpush2.msra.mxu0 0.0
        %595 = vmatprep.subr.mxu0 0.0
        %596 = vmatpush2.msra.mxu0 0.0
        %597 = vmatprep.subr.mxu0 0.0
        %598 = vmatpush2.msra.mxu0 0.0
        %599 = vmatprep.subr.mxu0 0.0
        %600 = vmatpush2.msra.mxu0 0.0
        %601 = vmatprep.subr.mxu0 0.0
        %602 = vmatpush2.msra.mxu0 0.0
        %603 = vmatprep.subr.mxu0 0.0
        %604 = vmatpush2.msra.mxu0 0.0
        %605 = vmatprep.subr.mxu0 0.0
        %606 = vmatpush2.msra.mxu0 0.0
        %607 = vmatprep.subr.mxu0 0.0
        %608 = vmatpush2.msra.mxu0 0.0
        %609 = vmatprep.mubr.f32.mxu0 0.0
        %610 = vmatmul.mubr.f32.gmra.mxu0 %v543
        %v611 = vpop.f32.mrf.mxu0
        %v612 = vadd.f32 0.0, %v611
        %v613 = vpop.f32.mrf.mxu0
        %614 = vdwg.mxu0
        %v615 = vld [vmem:[%s4] sm:$0x1]
        %v617 = vsel %vm541, %v615, 0
        %v620 = vsel %vm541, %v458, 0
        %v623 = vsel %vm541, %v463, 0
        %625 = vmatprep.subr.mxu0 0.0
        %626 = vmatpush1.xpose.msra.mxu0 0.0
        %627 = vmatprep.subr.mxu0 0.0
        %628 = vmatpush1.xpose.msra.mxu0 0.0
        %629 = vmatprep.subr.mxu0 0.0
        %630 = vmatpush1.xpose.msra.mxu0 0.0
        %631 = vmatprep.subr.mxu0 0.0
        %632 = vmatpush1.xpose.msra.mxu0 0.0
        %633 = vmatprep.subr.mxu0 0.0
        %634 = vmatpush1.xpose.msra.mxu0 0.0
        %635 = vmatprep.subr.mxu0 0.0
        %636 = vmatpush1.xpose.msra.mxu0 0.0
        %637 = vmatprep.subr.mxu0 0.0
        %638 = vmatpush1.xpose.msra.mxu0 0.0
        %639 = vmatprep.subr.mxu0 0.0
        %640 = vmatpush1.xpose.msra.mxu0 0.0
        %641 = vmatprep.subr.mxu0 0.0
        %642 = vmatpush1.xpose.msra.mxu0 0.0
        %643 = vmatprep.subr.mxu0 0.0
        %644 = vmatpush1.xpose.msra.mxu0 0.0
        %645 = vmatprep.subr.mxu0 0.0
        %646 = vmatpush1.xpose.msra.mxu0 0.0
        %647 = vmatprep.subr.mxu0 0.0
        %648 = vmatpush1.xpose.msra.mxu0 0.0
        %649 = vmatprep.subr.mxu0 0.0
        %650 = vmatpush1.xpose.msra.mxu0 0.0
        %651 = vmatprep.subr.mxu0 0.0
        %652 = vmatpush1.xpose.msra.mxu0 0.0
        %653 = vmatprep.subr.mxu0 0.0
        %654 = vmatpush1.xpose.msra.mxu0 %v623
        %655 = vmatprep.subr.mxu0 0.0
        %656 = vmatpush1.xpose.msra.mxu0 %v620
        %657 = vmatprep.subr.mxu0 0.0
        %658 = vmatpush2.xpose.msra.mxu0 0.0
        %659 = vmatprep.subr.mxu0 0.0
        %660 = vmatpush2.xpose.msra.mxu0 0.0
        %661 = vmatprep.subr.mxu0 0.0
        %662 = vmatpush2.xpose.msra.mxu0 0.0
        %663 = vmatprep.subr.mxu0 0.0
        %664 = vmatpush2.xpose.msra.mxu0 0.0
        %665 = vmatprep.subr.mxu0 0.0
        %666 = vmatpush2.xpose.msra.mxu0 0.0
        %667 = vmatprep.subr.mxu0 0.0
        %668 = vmatpush2.xpose.msra.mxu0 0.0
        %669 = vmatprep.subr.mxu0 0.0
        %670 = vmatpush2.xpose.msra.mxu0 0.0
        %671 = vmatprep.subr.mxu0 0.0
        %672 = vmatpush2.xpose.msra.mxu0 0.0
        %673 = vmatprep.subr.mxu0 0.0
        %674 = vmatpush2.xpose.msra.mxu0 0.0
        %675 = vmatprep.subr.mxu0 0.0
        %676 = vmatpush2.xpose.msra.mxu0 0.0
        %677 = vmatprep.subr.mxu0 0.0
        %678 = vmatpush2.xpose.msra.mxu0 0.0
        %679 = vmatprep.subr.mxu0 0.0
        %680 = vmatpush2.xpose.msra.mxu0 0.0
        %681 = vmatprep.subr.mxu0 0.0
        %682 = vmatpush2.xpose.msra.mxu0 0.0
        %683 = vmatprep.subr.mxu0 0.0
        %684 = vmatpush2.xpose.msra.mxu0 0.0
        %685 = vmatprep.subr.mxu0 0.0
        %686 = vmatpush2.xpose.msra.mxu0 0.0
        %687 = vmatprep.subr.mxu0 0.0
        %688 = vmatpush2.xpose.msra.mxu0 0.0
        %689 = vmatprep.mubr.f32.mxu0 0.0
        %690 = vmatmul.mubr.f32.gmra.mxu0 %v617
        %v691 = vpop.f32.mrf.mxu0
        %v692 = vadd.f32 0.0, %v691
        %v693 = vpop.f32.mrf.mxu0
        %694 = vdwg.mxu0
        %s695 = sld [smem:[#allocation2]]
        %697 = vset.pattern.permute.xlu0 0
        %698 = vperm.xlu0 %697, %v612
        %v699 = vpop.permute.xlu0 %698
        %v701 = vlaneseq
        %v702 = vshrl.u32 %v701, 7
        %v703 = vsub.s32 0, %v702
        %v704 = vrot.slane %v692, %v703
        %v705 = vadd.f32 %v699, %v704
        %v706 = vld [vmem:[%s318] sm:$0xff]
        %v707 = vstv %s695
        %v708 = vmul.f32 %v707, %v706
        %v709 = vadd.f32 %v705, %v708
        %vm710 = vcmp.gt.f32.partialorder %v709, 0.0
        %v711 = vmul.f32 %v709, 0.2
        %v712 = vsel %vm710, %v709, %v711
        %v713 = vld [vmem:[%s327] sm:$0xff]
        %vm714 = vcmp.gt.f32.partialorder %v713, 0.0
        %v715 = vsel %vm714, %v712, -9e+15
        %vm716 = vcmask 130048
        %v717 = vsel %vm716, %v715, -inf
        %718 = vmax.xlane.f32.xlu0 %v717
        %v719 = vpop.xlane.xlu0 %718
        %v720 = vsub.f32 %v715, %v719
        %v721 = vmul.f32 %v720, 1.442695
        %v722 = vpow.pop %v721
        %v723 = vsel %vm716, %v722, 0.0
        %724 = vadd.xlane.f32.xlu0 %v723
        %v725 = vpop.xlane.xlu0 %724
        %v726 = vrcp.pop %v725
        %v727 = vmul.f32 %v725, %v726
        %v728 = vsub.f32 2.0, %v727
        %v729 = vmul.f32 %v726, %v728
        %v730 = vmul.f32 %v722, %v729
        %v732 = vsel %vm716, %v730, 0
        %734 = vmatprep.subr.mxu0 0.0
        %735 = vmatpush1.msra.mxu0 0.0
        %736 = vmatprep.subr.mxu0 0.0
        %737 = vmatpush1.msra.mxu0 0.0
        %738 = vmatprep.subr.mxu0 0.0
        %739 = vmatpush1.msra.mxu0 0.0
        %740 = vmatprep.subr.mxu0 0.0
        %741 = vmatpush1.msra.mxu0 0.0
        %742 = vmatprep.subr.mxu0 0.0
        %743 = vmatpush1.msra.mxu0 0.0
        %744 = vmatprep.subr.mxu0 0.0
        %745 = vmatpush1.msra.mxu0 0.0
        %746 = vmatprep.subr.mxu0 0.0
        %747 = vmatpush1.msra.mxu0 0.0
        %748 = vmatprep.subr.mxu0 0.0
        %749 = vmatpush1.msra.mxu0 0.0
        %750 = vmatprep.subr.mxu0 0.0
        %751 = vmatpush1.msra.mxu0 0.0
        %752 = vmatprep.subr.mxu0 0.0
        %753 = vmatpush1.msra.mxu0 0.0
        %754 = vmatprep.subr.mxu0 0.0
        %755 = vmatpush1.msra.mxu0 0.0
        %756 = vmatprep.subr.mxu0 0.0
        %757 = vmatpush1.msra.mxu0 0.0
        %758 = vmatprep.subr.mxu0 0.0
        %759 = vmatpush1.msra.mxu0 0.0
        %760 = vmatprep.subr.mxu0 0.0
        %761 = vmatpush1.msra.mxu0 0.0
        %762 = vmatprep.subr.mxu0 0.0
        %763 = vmatpush1.msra.mxu0 %v463
        %764 = vmatprep.subr.mxu0 0.0
        %765 = vmatpush1.msra.mxu0 %v458
        %766 = vmatprep.subr.mxu0 0.0
        %767 = vmatpush2.msra.mxu0 0.0
        %768 = vmatprep.subr.mxu0 0.0
        %769 = vmatpush2.msra.mxu0 0.0
        %770 = vmatprep.subr.mxu0 0.0
        %771 = vmatpush2.msra.mxu0 0.0
        %772 = vmatprep.subr.mxu0 0.0
        %773 = vmatpush2.msra.mxu0 0.0
        %774 = vmatprep.subr.mxu0 0.0
        %775 = vmatpush2.msra.mxu0 0.0
        %776 = vmatprep.subr.mxu0 0.0
        %777 = vmatpush2.msra.mxu0 0.0
        %778 = vmatprep.subr.mxu0 0.0
        %779 = vmatpush2.msra.mxu0 0.0
        %780 = vmatprep.subr.mxu0 0.0
        %781 = vmatpush2.msra.mxu0 0.0
        %782 = vmatprep.subr.mxu0 0.0
        %783 = vmatpush2.msra.mxu0 0.0
        %784 = vmatprep.subr.mxu0 0.0
        %785 = vmatpush2.msra.mxu0 0.0
        %786 = vmatprep.subr.mxu0 0.0
        %787 = vmatpush2.msra.mxu0 0.0
        %788 = vmatprep.subr.mxu0 0.0
        %789 = vmatpush2.msra.mxu0 0.0
        %790 = vmatprep.subr.mxu0 0.0
        %791 = vmatpush2.msra.mxu0 0.0
        %792 = vmatprep.subr.mxu0 0.0
        %793 = vmatpush2.msra.mxu0 0.0
        %794 = vmatprep.subr.mxu0 0.0
        %795 = vmatpush2.msra.mxu0 0.0
        %796 = vmatprep.subr.mxu0 0.0
        %797 = vmatpush2.msra.mxu0 0.0
        %798 = vmatprep.mubr.f32.mxu0 0.0
        %799 = vmatmul.mubr.f32.gmra.mxu0 %v732
        %v800 = vpop.f32.mrf.mxu0
        %v801 = vadd.f32 0.0, %v800
        %v802 = vpop.f32.mrf.mxu0
        %803 = vdwg.mxu0
        %804 = vst.msk [vmem:[%s375] sm:$0xff] %vm541, %v801
        %p805 = scmp.lt.s32.totalorder %s26, 1
        %s806 = scalar_select %p805, %s26, 1
        %s807 = smul.addr %s806, 8
        %s808 = scalar_lea.vmem %s8, %s807
        // Predicated region
        $region61: #{tpu_custom_call.1} parent=51 // pred_check
          %p809 = pneg %p227
        $region62: #{tpu_custom_call.1} parent=51 // pred_check_branch
          %811 = sbr.rel (%p809) target = $region64
        $region63: #{tpu_custom_call.1} parent=51 // pred_region
          _
        $region64: #{tpu_custom_call.1} parent=51 // pred_fallthru
          _
      $region52: #{tpu_custom_call.1} parent=5 // pred_fallthru
        _
      %p812 = scmp.le.s32.totalorder 2, %s21
      // Predicated region
      $region65: #{tpu_custom_call.1} parent=5 // pred_check
        %p813 = pneg %p812
      $region66: #{tpu_custom_call.1} parent=5 // pred_check_branch
        %815 = sbr.rel (%p813) target = $region68
      $region67: #{tpu_custom_call.1} parent=5 // pred_region
        %s816 = ssub.s32 %s21, 2
        // Predicated region
        $region69: #{tpu_custom_call.1} parent=67 // pred_check
          %p817 = pneg %p233
        $region70: #{tpu_custom_call.1} parent=67 // pred_check_branch
          %819 = sbr.rel (%p817) target = $region72
        $region71: #{tpu_custom_call.1} parent=67 // pred_region
          %p820 = scmp.lt.s32.totalorder %s27, 1
          %s821 = scalar_select %p820, %s27, 1
          %s822 = smul.addr %s821, 8
          %s823 = scalar_lea.vmem %s8, %s822
        $region72: #{tpu_custom_call.1} parent=67 // pred_fallthru
          _
      $region68: #{tpu_custom_call.1} parent=5 // pred_fallthru
        _
    $region6: #{tpu_custom_call.1} parent=1 // loop_footer
      %s25 = sadd.s32 1, %s21
    $region7: #{tpu_custom_call.1} parent=1 // loop_footer_branch
      %20 = sbr.rel target = $region3
    $region8: #{tpu_custom_call.1} parent=1 // loop_exit
      _
    %824 = vsyncpa [#allocation4], 1
    %s825 = scalar_lea.sflag [#allocation4], 1
    %826 = vsyncpa %s825, 1
    %827 = vsyncpa [#allocation6], 1
    %s828 = scalar_lea.sflag [#allocation6], 1
    %829 = vsyncpa %s828, 1

</llo_original>
